<compile_context>
chip_gen: v7x
topology: tpu7x:2x2x1
jax: 0.10.0
libtpu: 0.0.40
codegen_flags: <defaults>
</compile_context>

<pallas_src>
import jax
import jax.numpy as jnp
from jax import lax
from jax.experimental import pallas as pl
from jax.experimental.pallas import tpu as pltpu


def _round_up(x, m):
    return (x + m - 1) // m * m


def _con_loss_tile_kernel(feat_ref, mean_ref, lab_ref, out_ref):
    """Per-class partial sums for one row tile of the batch.

    feat_ref : [TB, Dp]  features, native dtype (ragged-tail rows hold undefined data)
    mean_ref : [Dp, C]   L2-normalized class means, pre-transposed, same dtype as feats
    lab_ref  : [TB, 1]   int32 labels; -1 marks padding / invalid rows
    out_ref  : [1, 3, C] f32 partials for this tile:
                 row0 = count[c], row1 = sum_i 1[l_i=c]*S[i,c], row2 = sum_i S[i,c]
                 with S[i,c] = normalize(x_i) . mean_c
    """
    tb = feat_ref.shape[0]
    c = mean_ref.shape[1]

    feats = feat_ref[...]                                    # [TB, Dp] native dtype
    lab = lab_ref[...]                                       # [TB, 1]  i32
    valid = lab >= 0                                         # [TB, 1]  bool

    # F.normalize(x, p=2, dim=1) folded into the matmul output:
    #   S[i, c] = (x_i . mean_c) * rsqrt(max(||x_i||^2, 1e-24))
    # (== x_i / clamp_min(||x_i||, 1e-12) dotted with mean_c); rsqrt runs on the EUP slot and
    # the scale touches only [TB, C] instead of the full [TB, Dp] tile.
    f32 = feats.astype(jnp.float32)
    sumsq = jnp.sum(f32 * f32, axis=1, keepdims=True)        # [TB, 1]
    r = lax.rsqrt(jnp.maximum(sumsq, 1e-24))                 # [TB, 1]

    raw = jnp.dot(feats, mean_ref[...],
                  precision=lax.Precision.HIGHEST,
                  preferred_element_type=jnp.float32)         # [TB, C]  MXU, f32 accumulation

    # where (not multiply): rows past the true batch contain undefined data (possibly Inf/NaN),
    # so a select is required to guarantee they contribute exact zeros.
    s = jnp.where(valid, raw * r, 0.0)                        # [TB, C]

    class_ids = lax.broadcasted_iota(jnp.int32, (tb, c), 1)   # [TB, C]
    one_hot = (lab == class_ids).astype(jnp.float32)          # padded label -1 matches no class

    # Axis-0 sums are mostly plain vreg adds (VPU) plus one small 8->1 sublane reduce each.
    cnt = jnp.sum(one_hot, axis=0, keepdims=True)              # [1, C]
    diag = jnp.sum(one_hot * s, axis=0, keepdims=True)         # [1, C]
    colsum = jnp.sum(s, axis=0, keepdims=True)                 # [1, C]

    out_ref[0, 0:1, :] = cnt
    out_ref[0, 1:2, :] = diag
    out_ref[0, 2:3, :] = colsum


def con_loss_real(features, labels, seen_feats_mean, *, row_tile=None):
    """features: [B, D] float, labels: [B] int in [0, C), seen_feats_mean: [C, D] (rows L2-normalized)."""
    if features.dtype not in (jnp.float32, jnp.bfloat16, jnp.float16):
        features = features.astype(jnp.float32)
    feat_dtype = features.dtype
    itemsize = features.dtype.itemsize
    labels = labels.astype(jnp.int32)

    B, D = features.shape
    C = seen_feats_mean.shape[0]

    # Lane-dense feature dim (no-op when D is already a multiple of 128).
    d_pad = _round_up(D, 128)
    if d_pad != D:
        features = jnp.pad(features, ((0, 0), (0, d_pad - D)))
        seen_feats_mean = jnp.pad(seen_feats_mean, ((0, 0), (0, d_pad - D)))
    # Tiny pre-transpose so the kernel runs the canonical [TB, Dp] x [Dp, C] matmul.
    means_t = jnp.transpose(seen_feats_mean).astype(feat_dtype)          # [Dp, C]

    # Row tile from a VMEM budget (~2 MiB of native-dtype feature data per pipeline buffer),
    # rounded for sublane packing (16 rows for 16-bit dtypes); no arbitrary row cap.
    row_mult = 8 if itemsize >= 4 else 16
    max_tile = _round_up(B, row_mult)
    if row_tile is None:
        row_tile = (2 * 1024 * 1024) // (d_pad * itemsize)
    row_tile = int(min(max(int(row_tile), row_mult), 2048, max_tile))
    row_tile = max(row_mult, (row_tile // row_mult) * row_mult)

    num_tiles = -(-B // row_tile)
    b_pad = num_tiles * row_tile
    # Only labels get padded (B int32s — cheap); features are streamed unpadded and the ragged
    # last tile is masked in-kernel via the -1 labels.
    labels2d = jnp.pad(labels, (0, b_pad - B), constant_values=-1).reshape(b_pad, 1)

    # Generation-aware VMEM budget: tile footprint + headroom, capped at 75% of physical VMEM
    # (64 MiB per TensorCore on v7x, 128 MiB on v5e/v6e).
    try:
        vmem_cap = int(pltpu.get_tpu_info().vmem_capacity_bytes)
    except Exception:
        vmem_cap = 64 * 1024 * 1024
    feat_buf = 2 * row_tile * d_pad * itemsize        # double-buffered feature tiles
    mean_buf = 2 * d_pad * C * itemsize               # resident means (default double-buffered)
    temp_buf = 4 * row_tile * d_pad * 4               # f32 in-kernel temporaries
    small = 4 * row_tile * max(C, 128) * 4 + (1 << 20)
    vmem_limit = int(min(vmem_cap * 3 // 4,
                         max(32 * 1024 * 1024, feat_buf + mean_buf + temp_buf + small)))

    cost = pl.CostEstimate(
        flops=2 * B * d_pad * C + 3 * B * d_pad,
        transcendentals=B,
        bytes_accessed=B * d_pad * itemsize + d_pad * C * itemsize
        + b_pad * 4 + num_tiles * 3 * C * 4,
    )

    partials = pl.pallas_call(
        _con_loss_tile_kernel,
        out_shape=jax.ShapeDtypeStruct((num_tiles, 3, C), jnp.float32),
        grid=(num_tiles,),
        in_specs=[
            pl.BlockSpec((row_tile, d_pad), lambda i: (i, 0)),   # streamed feature rows
            pl.BlockSpec((d_pad, C), lambda i: (0, 0)),          # resident class means
            pl.BlockSpec((row_tile, 1), lambda i: (i, 0)),       # labels for this tile
        ],
        out_specs=pl.BlockSpec((1, 3, C), lambda i: (i, 0, 0)),
        compiler_params=pltpu.CompilerParams(
            # Each step writes its own partials -> no cross-step state, so the axis can be
            # "parallel" (lets v7x spread tiles over both TensorCores; no-op on v5e/v6e).
            dimension_semantics=("parallel",),
            vmem_limit_bytes=vmem_limit,
        ),
        cost_estimate=cost,
    )(features, means_t, labels2d)

    # O(C) final combine: eye / neg masks eliminated algebraically.
    totals = jnp.sum(partials, axis=0)          # [3, C]
    cnt, diag, colsum = totals[0], totals[1], totals[2]
    bsz = float(B)
    sumsq_cnt = jnp.sum(cnt * cnt)
    diag_sum = jnp.sum(diag)                    # sum_i dot_prod[i, i]
    same_sum = jnp.sum(cnt * diag)              # sum over same-label pairs (incl. diagonal)
    total_sum = jnp.sum(cnt * colsum)           # sum over all pairs
    pos_sum = same_sum - diag_sum               # same label, off-diagonal
    neg_sum = total_sum - same_sum               # different label
    pos_cnt = sumsq_cnt - bsz
    neg_cnt = bsz * bsz - sumsq_cnt
    pos_mean = pos_sum / (pos_cnt + 1e-6)
    neg_mean = neg_sum / (neg_cnt + 1e-6)
    return 1.0 - pos_mean + (1.0 + neg_mean)


def _reference(features, labels, seen_feats_mean):
    feats_n = features / jnp.maximum(
        jnp.linalg.norm(features, axis=1, keepdims=True), 1e-12)
    gath = jnp.take(seen_feats_mean, labels, axis=0)
    dot_prod = jnp.matmul(feats_n, gath.T, precision=lax.Precision.HIGHEST)
    mask = labels[:, None] == labels[None, :]
    eye = jnp.eye(labels.shape[0], dtype=bool)
    mask_pos = (mask & ~eye).astype(jnp.float32)
    mask_neg = (~mask).astype(jnp.float32)
    pos = jnp.sum(mask_pos * dot_prod) / (jnp.sum(mask_pos) + 1e-6)
    neg = jnp.sum(mask_neg * dot_prod) / (jnp.sum(mask_neg) + 1e-6)
    return 1.0 - pos + (1.0 + neg)


if __name__ == "__main__":
    key = jax.random.PRNGKey(0)
    # Small demo shapes; B deliberately not a tile multiple (ragged last tile) and D < 128
    # (exercises the lane-padding path).
    B, D, C = 30, 32, 4

    k1, k2, k3 = jax.random.split(key, 3)
    features_mean = jax.random.normal(k1, (C, D), dtype=jnp.float32)
    features = jax.random.normal(k2, (B, D), dtype=jnp.float32)
    labels = jax.random.randint(k3, (B,), 0, C, dtype=jnp.int32)

    # __init__: seen_feats_mean = F.normalize(features_mean, p=2, dim=1)
    seen_feats_mean = features_mean / jnp.maximum(
        jnp.linalg.norm(features_mean, axis=1, keepdims=True), 1e-12)

    # row_tile=8 -> 4 grid steps including a ragged last tile (rows 24..29 valid, 30..31 masked).
    loss = con_loss_real(features, labels, seen_feats_mean, row_tile=8)
    loss = jax.block_until_ready(loss)

    ref = _reference(features, labels, seen_feats_mean)
    # f32 MXU operands (precision=HIGHEST) -> much tighter than the old bf16 3e-2 tolerance.
    assert jnp.allclose(loss, ref, atol=2e-3, rtol=0.0), (loss, ref)

    print("KERNEL_OK")
</pallas_src>

<mosaic_0001>
module attributes {stable_mosaic.version = 11 : i64} {
  func.func @_con_loss_tile_kernel(%arg0: i32, %arg1: memref<8x128xf32, #tpu.memory_space<vmem>>, %arg2: memref<128x4xf32, #tpu.memory_space<vmem>>, %arg3: memref<8x1xi32, #tpu.memory_space<vmem>>, %arg4: memref<1x3x4xf32, #tpu.memory_space<vmem>>) attributes {dimension_semantics = [#tpu.dimension_semantics<parallel>], iteration_bounds = array<i64: 4>, scalar_prefetch = 0 : i64, scratch_operands = 0 : i64, tpu.core_type = #tpu.core_type<tc>, window_params = [{transform_indices = @transform_0, window_bounds = array<i64: 8, 128>}, {pipeline_mode = #tpu.pipeline_mode<synchronous>, transform_indices = @transform_1, window_bounds = array<i64: 128, 4>}, {transform_indices = @transform_2, window_bounds = array<i64: 8, 1>}, {transform_indices = @transform_3, window_bounds = array<i64: 1, 3, 4>}]} {
    %c0 = arith.constant 0 : index
    %c0_0 = arith.constant 0 : index
    %0 = vector.load %arg1[%c0, %c0_0] : memref<8x128xf32, #tpu.memory_space<vmem>>, vector<8x128xf32>
    %c0_1 = arith.constant 0 : index
    %c0_2 = arith.constant 0 : index
    %1 = vector.load %arg3[%c0_1, %c0_2] : memref<8x1xi32, #tpu.memory_space<vmem>>, vector<8x1xi32>
    %c0_i32 = arith.constant 0 : i32
    %2 = vector.broadcast %c0_i32 : i32 to vector<8x1xi32>
    %3 = arith.cmpi sge, %1, %2 : vector<8x1xi32>
    %4 = arith.mulf %0, %0 : vector<8x128xf32>
    %cst = arith.constant dense<0.000000e+00> : vector<8xf32>
    %5 = vector.multi_reduction <add>, %4, %cst [1] : vector<8x128xf32> to vector<8xf32>
    %6 = vector.shape_cast %5 : vector<8xf32> to vector<8x1xf32>
    %cst_3 = arith.constant 1.000000e-24 : f32
    %7 = vector.broadcast %cst_3 : f32 to vector<8x1xf32>
    %8 = arith.maximumf %6, %7 : vector<8x1xf32>
    %9 = math.rsqrt %8 : vector<8x1xf32>
    %c0_4 = arith.constant 0 : index
    %c0_5 = arith.constant 0 : index
    %10 = vector.load %arg2[%c0_4, %c0_5] : memref<128x4xf32, #tpu.memory_space<vmem>>, vector<128x4xf32>
    %cst_6 = arith.constant dense<0.000000e+00> : vector<8x4xf32>
    %11 = tpu.matmul %0, %10, %cst_6 {dimension_numbers = #tpu.dot_dimension_numbers<[1], [0], [0], [1], [0, 0, 1, 1], [], []>, precision = #tpu.contract_precision<fp32>} : vector<8x128xf32>, vector<128x4xf32>, vector<8x4xf32> -> vector<8x4xf32>
    %12 = vector.broadcast %9 : vector<8x1xf32> to vector<8x4xf32>
    %13 = arith.mulf %11, %12 : vector<8x4xf32>
    %cst_7 = arith.constant 0.000000e+00 : f32
    %14 = vector.shape_cast %3 : vector<8x1xi1> to vector<8x1xi1>
    %15 = vector.broadcast %14 : vector<8x1xi1> to vector<8x4xi1>
    %16 = vector.broadcast %cst_7 : f32 to vector<8x4xf32>
    %17 = arith.select %15, %13, %16 : vector<8x4xi1>, vector<8x4xf32>
    %18 = tpu.iota {dimensions = array<i32: 1>} : vector<8x4xi32>
    %19 = vector.broadcast %1 : vector<8x1xi32> to vector<8x4xi32>
    %20 = arith.cmpi eq, %19, %18 : vector<8x4xi32>
    %21 = arith.extui %20 : vector<8x4xi1> to vector<8x4xi32>
    %22 = arith.sitofp %21 : vector<8x4xi32> to vector<8x4xf32>
    %cst_8 = arith.constant dense<0.000000e+00> : vector<4xf32>
    %23 = vector.multi_reduction <add>, %22, %cst_8 [0] : vector<8x4xf32> to vector<4xf32>
    %24 = vector.shape_cast %23 : vector<4xf32> to vector<1x4xf32>
    %25 = arith.mulf %22, %17 : vector<8x4xf32>
    %cst_9 = arith.constant dense<0.000000e+00> : vector<4xf32>
    %26 = vector.multi_reduction <add>, %25, %cst_9 [0] : vector<8x4xf32> to vector<4xf32>
    %27 = vector.shape_cast %26 : vector<4xf32> to vector<1x4xf32>
    %cst_10 = arith.constant dense<0.000000e+00> : vector<4xf32>
    %28 = vector.multi_reduction <add>, %17, %cst_10 [0] : vector<8x4xf32> to vector<4xf32>
    %29 = vector.shape_cast %28 : vector<4xf32> to vector<1x4xf32>
    %c0_11 = arith.constant 0 : index
    %c0_12 = arith.constant 0 : index
    %c0_13 = arith.constant 0 : index
    %30 = vector.load %arg4[%c0_11, %c0_12, %c0_13] : memref<1x3x4xf32, #tpu.memory_space<vmem>>, vector<1x1x4xf32>
    %31 = vector.shape_cast %30 : vector<1x1x4xf32> to vector<1x4xf32>
    %32 = vector.shape_cast %24 : vector<1x4xf32> to vector<1x1x4xf32>
    tpu.vector_store %arg4[%c0_11, %c0_12, %c0_13], %32 {strides = array<i32>} : memref<1x3x4xf32, #tpu.memory_space<vmem>>, vector<1x1x4xf32>,
    %c0_14 = arith.constant 0 : index
    %c1 = arith.constant 1 : index
    %c0_15 = arith.constant 0 : index
    %33 = vector.load %arg4[%c0_14, %c1, %c0_15] : memref<1x3x4xf32, #tpu.memory_space<vmem>>, vector<1x1x4xf32>
    %34 = vector.shape_cast %33 : vector<1x1x4xf32> to vector<1x4xf32>
    %35 = vector.shape_cast %27 : vector<1x4xf32> to vector<1x1x4xf32>
    tpu.vector_store %arg4[%c0_14, %c1, %c0_15], %35 {strides = array<i32>} : memref<1x3x4xf32, #tpu.memory_space<vmem>>, vector<1x1x4xf32>,
    %c0_16 = arith.constant 0 : index
    %c2 = arith.constant 2 : index
    %c0_17 = arith.constant 0 : index
    %36 = vector.load %arg4[%c0_16, %c2, %c0_17] : memref<1x3x4xf32, #tpu.memory_space<vmem>>, vector<1x1x4xf32>
    %37 = vector.shape_cast %36 : vector<1x1x4xf32> to vector<1x4xf32>
    %38 = vector.shape_cast %29 : vector<1x4xf32> to vector<1x1x4xf32>
    tpu.vector_store %arg4[%c0_16, %c2, %c0_17], %38 {strides = array<i32>} : memref<1x3x4xf32, #tpu.memory_space<vmem>>, vector<1x1x4xf32>,
    return
  }
  func.func @transform_0(%arg0: i32) -> (i32, i32) {
    %c0_i32 = arith.constant 0 : i32
    %c0_i32_0 = arith.constant 0 : i32
    return %arg0, %c0_i32 : i32, i32
  }
  func.func @transform_1(%arg0: i32) -> (i32, i32) {
    %c0_i32 = arith.constant 0 : i32
    %c0_i32_0 = arith.constant 0 : i32
    %c0_i32_1 = arith.constant 0 : i32
    return %c0_i32, %c0_i32_0 : i32, i32
  }
  func.func @transform_2(%arg0: i32) -> (i32, i32) {
    %c0_i32 = arith.constant 0 : i32
    %c0_i32_0 = arith.constant 0 : i32
    return %arg0, %c0_i32 : i32, i32
  }
  func.func @transform_3(%arg0: i32) -> (i32, i32, i32) {
    %c0_i32 = arith.constant 0 : i32
    %c0_i32_0 = arith.constant 0 : i32
    %c0_i32_1 = arith.constant 0 : i32
    return %arg0, %c0_i32, %c0_i32_0 : i32, i32, i32
  }
}

</mosaic_0001>

<llo_original>
// kernel: tpu_custom_call.1
$region0: #{tpu_custom_call.1}
  #allocation0 [shape = 'u32[]', space=smem, size = 0x4, offset = 0x4, fixed_abs, tag = 'smem constant byte address 0x4 - core index']
  #allocation1 [shape = 'u32[144,128]{1,0:T(1,128)}', space=vmem, size = 0x12000, scoped, tag = 'internal scratch']
  %s0 = inlined_call_operand.vmem [shape: f32[30,128], index: 0, kind: input, shape index: {}]
  %s1 = inlined_call_operand.vmem [shape: f32[128,4], index: 1, kind: input, shape index: {}]
  %s2 = inlined_call_operand.vmem [shape: s32[32,1], index: 2, kind: input, shape index: {}]
  %s3 = inlined_call_operand.vmem [shape: f32[4,3,4], index: 3, kind: output, shape index: {}]
  %s4 = sld [smem:[#allocation0]]
  $region45: #{tpu_custom_call.1} parent=0
    _
  %s6 = ssub.s32 1, %s4
  %s7 = scalar_select 0, %s6, %s4
  loop: start=0, step=1, limit=6
  $region2: #{tpu_custom_call.1} parent=0 // loop_pre_header
    _
  $region3: #{tpu_custom_call.1} parent=0 // loop_header
    %s9 = sphi 0, %s13
    %p10 = scmp.ge.s32.totalorder %s9, 6
    %s19 = sphi 0, %s21
    %s22 = sphi 0, %s19
    %s23 = sphi 0, %s22
    %s39 = sphi 0, %s23
    %s43 = sphi 0, %s43
    %s45 = sphi 0, %s43
    %s46 = sphi 0, %s45
    %s60 = sphi 0, %s46
    %s66 = sphi 0, %s68
    %s69 = sphi 0, %s66
    %s70 = sphi 0, %s69
    %s86 = sphi 0, %s70
    %s92 = sphi 0, %s94
    %s95 = sphi 0, %s92
    %s96 = sphi 0, %s95
    %s112 = sphi 0, %s96
  $region4: #{tpu_custom_call.1} parent=0 // loop_header_branch
    %12 = sbr.rel (%p10) target = $region8
  $region5: #{tpu_custom_call.1} parent=0 // loop_body
    %s14 = ssub.s32 %s9, 1
    %s15 = ssub.s32 %s9, 2
    %s16 = sadd.s32 %s9, 1
    %s17 = ssub.s32 %s9, %s16
    %p18 = scmp.eq.s32.totalorder %s17, 0
    %s20 = sadd.s32 %s19, 1
    %s21 = scalar_select %p18, %s19, %s20
    %p24 = pneg %p18
    %p25 = scmp.eq.s32.totalorder %s9, 3
    %p26 = por %p24, %p25
    %p27 = scmp.ne.s32.totalorder %s19, %s22
    %p28 = scmp.eq.s32.totalorder %s9, 0
    %p29 = por %p27, %p28
    %p30 = scmp.ne.s32.totalorder %s19, %s22
    %p31 = scmp.eq.s32.totalorder %s14, 3
    %p32 = por %p30, %p31
    %p33 = scmp.ne.s32.totalorder %s22, %s23
    %p34 = scmp.eq.s32.totalorder %s14, 0
    %p35 = por %p33, %p34
    %p36 = scmp.ne.s32.totalorder %s22, %s23
    %p37 = scmp.eq.s32.totalorder %s15, 3
    %p38 = por %p36, %p37
    %p40 = scmp.ne.s32.totalorder %s23, %s39
    %p41 = scmp.eq.s32.totalorder %s15, 0
    %p42 = por %p40, %p41
    %s44 = sadd.s32 %s43, 1
    %p47 = scmp.eq.s32.totalorder %s9, 3
    %p48 = scmp.ne.s32.totalorder %s43, %s45
    %p49 = scmp.eq.s32.totalorder %s9, 0
    %p50 = por %p48, %p49
    %p51 = scmp.ne.s32.totalorder %s43, %s45
    %p52 = scmp.eq.s32.totalorder %s14, 3
    %p53 = por %p51, %p52
    %p54 = scmp.ne.s32.totalorder %s45, %s46
    %p55 = scmp.eq.s32.totalorder %s14, 0
    %p56 = por %p54, %p55
    %p57 = scmp.ne.s32.totalorder %s45, %s46
    %p58 = scmp.eq.s32.totalorder %s15, 3
    %p59 = por %p57, %p58
    %p61 = scmp.ne.s32.totalorder %s46, %s60
    %p62 = scmp.eq.s32.totalorder %s15, 0
    %p63 = por %p61, %p62
    %s64 = ssub.s32 %s9, %s16
    %p65 = scmp.eq.s32.totalorder %s64, 0
    %s67 = sadd.s32 %s66, 1
    %s68 = scalar_select %p65, %s66, %s67
    %p71 = pneg %p65
    %p72 = scmp.eq.s32.totalorder %s9, 3
    %p73 = por %p71, %p72
    %p74 = scmp.ne.s32.totalorder %s66, %s69
    %p75 = scmp.eq.s32.totalorder %s9, 0
    %p76 = por %p74, %p75
    %p77 = scmp.ne.s32.totalorder %s66, %s69
    %p78 = scmp.eq.s32.totalorder %s14, 3
    %p79 = por %p77, %p78
    %p80 = scmp.ne.s32.totalorder %s69, %s70
    %p81 = scmp.eq.s32.totalorder %s14, 0
    %p82 = por %p80, %p81
    %p83 = scmp.ne.s32.totalorder %s69, %s70
    %p84 = scmp.eq.s32.totalorder %s15, 3
    %p85 = por %p83, %p84
    %p87 = scmp.ne.s32.totalorder %s70, %s86
    %p88 = scmp.eq.s32.totalorder %s15, 0
    %p89 = por %p87, %p88
    %s90 = ssub.s32 %s9, %s16
    %p91 = scmp.eq.s32.totalorder %s90, 0
    %s93 = sadd.s32 %s92, 1
    %s94 = scalar_select %p91, %s92, %s93
    %p97 = pneg %p91
    %p98 = scmp.eq.s32.totalorder %s9, 3
    %p99 = por %p97, %p98
    %p100 = scmp.ne.s32.totalorder %s92, %s95
    %p101 = scmp.eq.s32.totalorder %s9, 0
    %p102 = por %p100, %p101
    %p103 = scmp.ne.s32.totalorder %s92, %s95
    %p104 = scmp.eq.s32.totalorder %s14, 3
    %p105 = por %p103, %p104
    %p106 = scmp.ne.s32.totalorder %s95, %s96
    %p107 = scmp.eq.s32.totalorder %s14, 0
    %p108 = por %p106, %p107
    %p109 = scmp.ne.s32.totalorder %s95, %s96
    %p110 = scmp.eq.s32.totalorder %s15, 3
    %p111 = por %p109, %p110
    %p113 = scmp.ne.s32.totalorder %s96, %s112
    %p114 = scmp.eq.s32.totalorder %s15, 0
    %p115 = por %p113, %p114
    %p116 = scmp.le.s32.totalorder 1, %s9
    %p117 = scmp.lt.s32.totalorder %s9, 5
    %p118 = pnand %p116, %p117
    %p119 = pneg %p118
    // Predicated region
    $region9: #{tpu_custom_call.1} parent=5 // pred_check
      _
    $region10: #{tpu_custom_call.1} parent=5 // pred_check_branch
      %121 = sbr.rel (%p118) target = $region12
    $region11: #{tpu_custom_call.1} parent=5 // pred_region
      %s122 = ssub.s32 %s9, 1
      // Predicated region
      $region13: #{tpu_custom_call.1} parent=11 // pred_check
        %p123 = pneg %p56
      $region14: #{tpu_custom_call.1} parent=11 // pred_check_branch
        %125 = sbr.rel (%p123) target = $region16
      $region15: #{tpu_custom_call.1} parent=11 // pred_region
        _
      $region16: #{tpu_custom_call.1} parent=11 // pred_fallthru
        _
    $region12: #{tpu_custom_call.1} parent=5 // pred_fallthru
      _
    %p126 = scmp.lt.s32.totalorder %s9, 4
    // Predicated region
    $region17: #{tpu_custom_call.1} parent=5 // pred_check
      %p127 = pneg %p126
    $region18: #{tpu_custom_call.1} parent=5 // pred_check_branch
      %129 = sbr.rel (%p127) target = $region20
    $region19: #{tpu_custom_call.1} parent=5 // pred_region
      // Predicated region
      $region21: #{tpu_custom_call.1} parent=19 // pred_check
        %p130 = pneg %p29
      $region22: #{tpu_custom_call.1} parent=19 // pred_check_branch
        %132 = sbr.rel (%p130) target = $region24
      $region23: #{tpu_custom_call.1} parent=19 // pred_region
        %p133 = scmp.lt.s32.totalorder %s9, 3
        %s134 = scalar_select %p133, %s9, 3
        %s135 = smul.addr %s134, 8
        %s136 = scalar_lea.vmem %s0, %s135
      $region24: #{tpu_custom_call.1} parent=19 // pred_fallthru
        _
      // Predicated region
      $region25: #{tpu_custom_call.1} parent=19 // pred_check
        %p137 = pneg %p76
      $region26: #{tpu_custom_call.1} parent=19 // pred_check_branch
        %139 = sbr.rel (%p137) target = $region28
      $region27: #{tpu_custom_call.1} parent=19 // pred_region
        %p140 = scmp.lt.s32.totalorder %s9, 3
        %s141 = scalar_select %p140, %s9, 3
        %s142 = smul.addr %s141, 8
        %s143 = scalar_lea.vmem %s2, %s142
      $region28: #{tpu_custom_call.1} parent=19 // pred_fallthru
        _
    $region20: #{tpu_custom_call.1} parent=5 // pred_fallthru
      _
    %p144 = scmp.le.s32.totalorder 1, %s9
    %p145 = scmp.lt.s32.totalorder %s9, 5
    %p146 = pnand %p144, %p145
    %p147 = pneg %p146
    // Predicated region
    $region29: #{tpu_custom_call.1} parent=5 // pred_check
      _
    $region30: #{tpu_custom_call.1} parent=5 // pred_check_branch
      %149 = sbr.rel (%p146) target = $region32
    $region31: #{tpu_custom_call.1} parent=5 // pred_region
      %s150 = ssub.s32 %s9, 1
      %p151 = scmp.lt.s32.totalorder %s14, 3
      %s152 = scalar_select %p151, %s14, 3
      %s153 = smul.addr %s152, 8
      %s154 = scalar_lea.vmem %s0, %s153
      %p155 = pneg %p35
      %p156 = pneg %p32
      %p157 = pneg %p56
      %p158 = pneg %p53
      %p159 = scmp.lt.s32.totalorder %s14, 3
      %s160 = scalar_select %p159, %s14, 3
      %s161 = smul.addr %s160, 8
      %s162 = scalar_lea.vmem %s2, %s161
      %p163 = pneg %p82
      %p164 = pneg %p79
      %p165 = pneg %p108
      %p166 = pneg %p105
      %p167 = scmp.lt.s32.totalorder %s14, 3
      %s168 = scalar_select %p167, %s14, 3
      %s169 = smul.addr %s168, 4
      %s170 = scalar_lea.vmem %s3, %s169
      %p171 = scmp.lt.s32.totalorder %s14, 3
      %s172 = scalar_select %p171, %s14, 3
      %s173 = smul.addr %s172, 8
      %s174 = scalar_lea.vmem %s0, %s173
      %p175 = scmp.lt.s32.totalorder %s14, 3
      %s176 = scalar_select %p175, %s14, 3
      %s177 = smul.addr %s176, 8
      %s178 = scalar_lea.vmem %s2, %s177
      %p179 = scmp.lt.s32.totalorder %s14, 3
      %s180 = scalar_select %p179, %s14, 3
      %s181 = smul.addr %s180, 4
      %s182 = scalar_lea.vmem %s3, %s181
      %v183 = vld [vmem:[%s174] sm:$0xff]
      %v184 = vld [vmem:[%s178] sm:$0xff]
      %vm185 = vcmp.ge.s32.totalorder %v184, 0
      %v186 = vmul.f32 %v183, %v183
      %187 = vadd.xlane.f32.xlu0 %v186
      %v188 = vpop.xlane.xlu0 %187
      %v189 = vmax.f32 %v188, 1e-24
      %v190 = vrsqrt.pop %v189
      %v191 = vld [vmem:[%s1] sm:$0xff]
      %v192 = vld [vmem:[%s1 + $0x8] sm:$0xff]
      %v193 = vld [vmem:[%s1 + $0x10] sm:$0xff]
      %v194 = vld [vmem:[%s1 + $0x18] sm:$0xff]
      %v195 = vld [vmem:[%s1 + $0x20] sm:$0xff]
      %v196 = vld [vmem:[%s1 + $0x28] sm:$0xff]
      %v197 = vld [vmem:[%s1 + $0x30] sm:$0xff]
      %v198 = vld [vmem:[%s1 + $0x38] sm:$0xff]
      %v199 = vld [vmem:[%s1 + $0x40] sm:$0xff]
      %v200 = vld [vmem:[%s1 + $0x48] sm:$0xff]
      %v201 = vld [vmem:[%s1 + $0x50] sm:$0xff]
      %v202 = vld [vmem:[%s1 + $0x58] sm:$0xff]
      %v203 = vld [vmem:[%s1 + $0x60] sm:$0xff]
      %v204 = vld [vmem:[%s1 + $0x68] sm:$0xff]
      %v205 = vld [vmem:[%s1 + $0x70] sm:$0xff]
      %v206 = vld [vmem:[%s1 + $0x78] sm:$0xff]
      %207 = vmatprep.subr.mxu0 0.0
      %v208 = vand.u32 %v191, 4294901760
      %209 = vmatpush1.msra.mxu0 %v208
      %210 = vmatprep.subr.mxu0 0.0
      %v211 = vand.u32 %v192, 4294901760
      %212 = vmatpush1.msra.mxu0 %v211
      %213 = vmatprep.subr.mxu0 0.0
      %v214 = vand.u32 %v193, 4294901760
      %215 = vmatpush1.msra.mxu0 %v214
      %216 = vmatprep.subr.mxu0 0.0
      %v217 = vand.u32 %v194, 4294901760
      %218 = vmatpush1.msra.mxu0 %v217
      %219 = vmatprep.subr.mxu0 0.0
      %v220 = vand.u32 %v195, 4294901760
      %221 = vmatpush1.msra.mxu0 %v220
      %222 = vmatprep.subr.mxu0 0.0
      %v223 = vand.u32 %v196, 4294901760
      %224 = vmatpush1.msra.mxu0 %v223
      %225 = vmatprep.subr.mxu0 0.0
      %v226 = vand.u32 %v197, 4294901760
      %227 = vmatpush1.msra.mxu0 %v226
      %228 = vmatprep.subr.mxu0 0.0
      %v229 = vand.u32 %v198, 4294901760
      %230 = vmatpush1.msra.mxu0 %v229
      %231 = vmatprep.subr.mxu0 0.0
      %v232 = vand.u32 %v199, 4294901760
      %233 = vmatpush1.msra.mxu0 %v232
      %234 = vmatprep.subr.mxu0 0.0
      %v235 = vand.u32 %v200, 4294901760
      %236 = vmatpush1.msra.mxu0 %v235
      %237 = vmatprep.subr.mxu0 0.0
      %v238 = vand.u32 %v201, 4294901760
      %239 = vmatpush1.msra.mxu0 %v238
      %240 = vmatprep.subr.mxu0 0.0
      %v241 = vand.u32 %v202, 4294901760
      %242 = vmatpush1.msra.mxu0 %v241
      %243 = vmatprep.subr.mxu0 0.0
      %v244 = vand.u32 %v203, 4294901760
      %245 = vmatpush1.msra.mxu0 %v244
      %246 = vmatprep.subr.mxu0 0.0
      %v247 = vand.u32 %v204, 4294901760
      %248 = vmatpush1.msra.mxu0 %v247
      %249 = vmatprep.subr.mxu0 0.0
      %v250 = vand.u32 %v205, 4294901760
      %251 = vmatpush1.msra.mxu0 %v250
      %252 = vmatprep.subr.mxu0 0.0
      %v253 = vand.u32 %v206, 4294901760
      %254 = vmatpush1.msra.mxu0 %v253
      %255 = vmatprep.subr.mxu0 0.0
      %256 = vmatpush1.msra.mxu0 0.0
      %257 = vmatprep.subr.mxu0 0.0
      %258 = vmatpush1.msra.mxu0 0.0
      %259 = vmatprep.subr.mxu0 0.0
      %260 = vmatpush1.msra.mxu0 0.0
      %261 = vmatprep.subr.mxu0 0.0
      %262 = vmatpush1.msra.mxu0 0.0
      %263 = vmatprep.subr.mxu0 0.0
      %264 = vmatpush1.msra.mxu0 0.0
      %265 = vmatprep.subr.mxu0 0.0
      %266 = vmatpush1.msra.mxu0 0.0
      %267 = vmatprep.subr.mxu0 0.0
      %268 = vmatpush1.msra.mxu0 0.0
      %269 = vmatprep.subr.mxu0 0.0
      %270 = vmatpush1.msra.mxu0 0.0
      %271 = vmatprep.subr.mxu0 0.0
      %272 = vmatpush1.msra.mxu0 0.0
      %273 = vmatprep.subr.mxu0 0.0
      %274 = vmatpush1.msra.mxu0 0.0
      %275 = vmatprep.subr.mxu0 0.0
      %276 = vmatpush1.msra.mxu0 0.0
      %277 = vmatprep.subr.mxu0 0.0
      %278 = vmatpush1.msra.mxu0 0.0
      %279 = vmatprep.subr.mxu0 0.0
      %280 = vmatpush1.msra.mxu0 0.0
      %281 = vmatprep.subr.mxu0 0.0
      %282 = vmatpush1.msra.mxu0 0.0
      %283 = vmatprep.subr.mxu0 0.0
      %284 = vmatpush1.msra.mxu0 0.0
      %285 = vmatprep.subr.mxu0 0.0
      %286 = vmatpush1.msra.mxu0 0.0
      %287 = vmatprep.mubr.f32.mxu0 0.0
      %v288 = vand.u32 %v183, 4294901760
      %v289 = vsub.f32 %v183, %v288
      %v290 = vand.u32 %v289, 4294901760
      %v291 = vsub.f32 %v289, %v290
      %v292 = vand.u32 %v291, 4294901760
      %293 = vmatmul.mubr.f32.gmra.mrb[0].mxu0 %v292
      %v294 = vpop.f32.mrb[0].mxu0
      %v295 = vadd.f32 0.0, %v294
      %v296 = vpop.f32.mrb[0].mxu0
      %297 = vdwg.mxu0
      %298 = vmatprep.subr.mxu0 0.0
      %v299 = vand.u32 %v191, 4294901760
      %v300 = vsub.f32 %v191, %v299
      %v301 = vand.u32 %v300, 4294901760
      %v302 = vsub.f32 %v300, %v301
      %v303 = vand.u32 %v302, 4294901760
      %304 = vmatpush1.msra.mxu0 %v303
      %305 = vmatprep.subr.mxu0 0.0
      %v306 = vand.u32 %v192, 4294901760
      %v307 = vsub.f32 %v192, %v306
      %v308 = vand.u32 %v307, 4294901760
      %v309 = vsub.f32 %v307, %v308
      %v310 = vand.u32 %v309, 4294901760
      %311 = vmatpush1.msra.mxu0 %v310
      %312 = vmatprep.subr.mxu0 0.0
      %v313 = vand.u32 %v193, 4294901760
      %v314 = vsub.f32 %v193, %v313
      %v315 = vand.u32 %v314, 4294901760
      %v316 = vsub.f32 %v314, %v315
      %v317 = vand.u32 %v316, 4294901760
      %318 = vmatpush1.msra.mxu0 %v317
      %319 = vmatprep.subr.mxu0 0.0
      %v320 = vand.u32 %v194, 4294901760
      %v321 = vsub.f32 %v194, %v320
      %v322 = vand.u32 %v321, 4294901760
      %v323 = vsub.f32 %v321, %v322
      %v324 = vand.u32 %v323, 4294901760
      %325 = vmatpush1.msra.mxu0 %v324
      %326 = vmatprep.subr.mxu0 0.0
      %v327 = vand.u32 %v195, 4294901760
      %v328 = vsub.f32 %v195, %v327
      %v329 = vand.u32 %v328, 4294901760
      %v330 = vsub.f32 %v328, %v329
      %v331 = vand.u32 %v330, 4294901760
      %332 = vmatpush1.msra.mxu0 %v331
      %333 = vmatprep.subr.mxu0 0.0
      %v334 = vand.u32 %v196, 4294901760
      %v335 = vsub.f32 %v196, %v334
      %v336 = vand.u32 %v335, 4294901760
      %v337 = vsub.f32 %v335, %v336
      %v338 = vand.u32 %v337, 4294901760
      %339 = vmatpush1.msra.mxu0 %v338
      %340 = vmatprep.subr.mxu0 0.0
      %v341 = vand.u32 %v197, 4294901760
      %v342 = vsub.f32 %v197, %v341
      %v343 = vand.u32 %v342, 4294901760
      %v344 = vsub.f32 %v342, %v343
      %v345 = vand.u32 %v344, 4294901760
      %346 = vmatpush1.msra.mxu0 %v345
      %347 = vmatprep.subr.mxu0 0.0
      %v348 = vand.u32 %v198, 4294901760
      %v349 = vsub.f32 %v198, %v348
      %v350 = vand.u32 %v349, 4294901760
      %v351 = vsub.f32 %v349, %v350
      %v352 = vand.u32 %v351, 4294901760
      %353 = vmatpush1.msra.mxu0 %v352
      %354 = vmatprep.subr.mxu0 0.0
      %v355 = vand.u32 %v199, 4294901760
      %v356 = vsub.f32 %v199, %v355
      %v357 = vand.u32 %v356, 4294901760
      %v358 = vsub.f32 %v356, %v357
      %v359 = vand.u32 %v358, 4294901760
      %360 = vmatpush1.msra.mxu0 %v359
      %361 = vmatprep.subr.mxu0 0.0
      %v362 = vand.u32 %v200, 4294901760
      %v363 = vsub.f32 %v200, %v362
      %v364 = vand.u32 %v363, 4294901760
      %v365 = vsub.f32 %v363, %v364
      %v366 = vand.u32 %v365, 4294901760
      %367 = vmatpush1.msra.mxu0 %v366
      %368 = vmatprep.subr.mxu0 0.0
      %v369 = vand.u32 %v201, 4294901760
      %v370 = vsub.f32 %v201, %v369
      %v371 = vand.u32 %v370, 4294901760
      %v372 = vsub.f32 %v370, %v371
      %v373 = vand.u32 %v372, 4294901760
      %374 = vmatpush1.msra.mxu0 %v373
      %375 = vmatprep.subr.mxu0 0.0
      %v376 = vand.u32 %v202, 4294901760
      %v377 = vsub.f32 %v202, %v376
      %v378 = vand.u32 %v377, 4294901760
      %v379 = vsub.f32 %v377, %v378
      %v380 = vand.u32 %v379, 4294901760
      %381 = vmatpush1.msra.mxu0 %v380
      %382 = vmatprep.subr.mxu0 0.0
      %v383 = vand.u32 %v203, 4294901760
      %v384 = vsub.f32 %v203, %v383
      %v385 = vand.u32 %v384, 4294901760
      %v386 = vsub.f32 %v384, %v385
      %v387 = vand.u32 %v386, 4294901760
      %388 = vmatpush1.msra.mxu0 %v387
      %389 = vmatprep.subr.mxu0 0.0
      %v390 = vand.u32 %v204, 4294901760
      %v391 = vsub.f32 %v204, %v390
      %v392 = vand.u32 %v391, 4294901760
      %v393 = vsub.f32 %v391, %v392
      %v394 = vand.u32 %v393, 4294901760
      %395 = vmatpush1.msra.mxu0 %v394
      %396 = vmatprep.subr.mxu0 0.0
      %v397 = vand.u32 %v205, 4294901760
      %v398 = vsub.f32 %v205, %v397
      %v399 = vand.u32 %v398, 4294901760
      %v400 = vsub.f32 %v398, %v399
      %v401 = vand.u32 %v400, 4294901760
      %402 = vmatpush1.msra.mxu0 %v401
      %403 = vmatprep.subr.mxu0 0.0
      %v404 = vand.u32 %v206, 4294901760
      %v405 = vsub.f32 %v206, %v404
      %v406 = vand.u32 %v405, 4294901760
      %v407 = vsub.f32 %v405, %v406
      %v408 = vand.u32 %v407, 4294901760
      %409 = vmatpush1.msra.mxu0 %v408
      %410 = vmatprep.subr.mxu0 0.0
      %411 = vmatpush1.msra.mxu0 0.0
      %412 = vmatprep.subr.mxu0 0.0
      %413 = vmatpush1.msra.mxu0 0.0
      %414 = vmatprep.subr.mxu0 0.0
      %415 = vmatpush1.msra.mxu0 0.0
      %416 = vmatprep.subr.mxu0 0.0
      %417 = vmatpush1.msra.mxu0 0.0
      %418 = vmatprep.subr.mxu0 0.0
      %419 = vmatpush1.msra.mxu0 0.0
      %420 = vmatprep.subr.mxu0 0.0
      %421 = vmatpush1.msra.mxu0 0.0
      %422 = vmatprep.subr.mxu0 0.0
      %423 = vmatpush1.msra.mxu0 0.0
      %424 = vmatprep.subr.mxu0 0.0
      %425 = vmatpush1.msra.mxu0 0.0
      %426 = vmatprep.subr.mxu0 0.0
      %427 = vmatpush1.msra.mxu0 0.0
      %428 = vmatprep.subr.mxu0 0.0
      %429 = vmatpush1.msra.mxu0 0.0
      %430 = vmatprep.subr.mxu0 0.0
      %431 = vmatpush1.msra.mxu0 0.0
      %432 = vmatprep.subr.mxu0 0.0
      %433 = vmatpush1.msra.mxu0 0.0
      %434 = vmatprep.subr.mxu0 0.0
      %435 = vmatpush1.msra.mxu0 0.0
      %436 = vmatprep.subr.mxu0 0.0
      %437 = vmatpush1.msra.mxu0 0.0
      %438 = vmatprep.subr.mxu0 0.0
      %439 = vmatpush1.msra.mxu0 0.0
      %440 = vmatprep.subr.mxu0 0.0
      %441 = vmatpush1.msra.mxu0 0.0
      %442 = vmatprep.mubr.f32.mxu0 0.0
      %v443 = vand.u32 %v183, 4294901760
      %444 = vmatmul.mubr.f32.gmra.mrb[0].mxu0 %v443
      %v445 = vpop.f32.mrb[0].mxu0
      %v446 = vadd.f32 %v295, %v445
      %v447 = vpop.f32.mrb[0].mxu0
      %448 = vdwg.mxu0
      %449 = vmatprep.subr.mxu0 0.0
      %v450 = vand.u32 %v191, 4294901760
      %v451 = vsub.f32 %v191, %v450
      %452 = vmatpush1.msra.mxu0 %v451
      %453 = vmatprep.subr.mxu0 0.0
      %v454 = vand.u32 %v192, 4294901760
      %v455 = vsub.f32 %v192, %v454
      %456 = vmatpush1.msra.mxu0 %v455
      %457 = vmatprep.subr.mxu0 0.0
      %v458 = vand.u32 %v193, 4294901760
      %v459 = vsub.f32 %v193, %v458
      %460 = vmatpush1.msra.mxu0 %v459
      %461 = vmatprep.subr.mxu0 0.0
      %v462 = vand.u32 %v194, 4294901760
      %v463 = vsub.f32 %v194, %v462
      %464 = vmatpush1.msra.mxu0 %v463
      %465 = vmatprep.subr.mxu0 0.0
      %v466 = vand.u32 %v195, 4294901760
      %v467 = vsub.f32 %v195, %v466
      %468 = vmatpush1.msra.mxu0 %v467
      %469 = vmatprep.subr.mxu0 0.0
      %v470 = vand.u32 %v196, 4294901760
      %v471 = vsub.f32 %v196, %v470
      %472 = vmatpush1.msra.mxu0 %v471
      %473 = vmatprep.subr.mxu0 0.0
      %v474 = vand.u32 %v197, 4294901760
      %v475 = vsub.f32 %v197, %v474
      %476 = vmatpush1.msra.mxu0 %v475
      %477 = vmatprep.subr.mxu0 0.0
      %v478 = vand.u32 %v198, 4294901760
      %v479 = vsub.f32 %v198, %v478
      %480 = vmatpush1.msra.mxu0 %v479
      %481 = vmatprep.subr.mxu0 0.0
      %v482 = vand.u32 %v199, 4294901760
      %v483 = vsub.f32 %v199, %v482
      %484 = vmatpush1.msra.mxu0 %v483
      %485 = vmatprep.subr.mxu0 0.0
      %v486 = vand.u32 %v200, 4294901760
      %v487 = vsub.f32 %v200, %v486
      %488 = vmatpush1.msra.mxu0 %v487
      %489 = vmatprep.subr.mxu0 0.0
      %v490 = vand.u32 %v201, 4294901760
      %v491 = vsub.f32 %v201, %v490
      %492 = vmatpush1.msra.mxu0 %v491
      %493 = vmatprep.subr.mxu0 0.0
      %v494 = vand.u32 %v202, 4294901760
      %v495 = vsub.f32 %v202, %v494
      %496 = vmatpush1.msra.mxu0 %v495
      %497 = vmatprep.subr.mxu0 0.0
      %v498 = vand.u32 %v203, 4294901760
      %v499 = vsub.f32 %v203, %v498
      %500 = vmatpush1.msra.mxu0 %v499
      %501 = vmatprep.subr.mxu0 0.0
      %v502 = vand.u32 %v204, 4294901760
      %v503 = vsub.f32 %v204, %v502
      %504 = vmatpush1.msra.mxu0 %v503
      %505 = vmatprep.subr.mxu0 0.0
      %v506 = vand.u32 %v205, 4294901760
      %v507 = vsub.f32 %v205, %v506
      %508 = vmatpush1.msra.mxu0 %v507
      %509 = vmatprep.subr.mxu0 0.0
      %v510 = vand.u32 %v206, 4294901760
      %v511 = vsub.f32 %v206, %v510
      %512 = vmatpush1.msra.mxu0 %v511
      %513 = vmatprep.subr.mxu0 0.0
      %514 = vmatpush1.msra.mxu0 0.0
      %515 = vmatprep.subr.mxu0 0.0
      %516 = vmatpush1.msra.mxu0 0.0
      %517 = vmatprep.subr.mxu0 0.0
      %518 = vmatpush1.msra.mxu0 0.0
      %519 = vmatprep.subr.mxu0 0.0
      %520 = vmatpush1.msra.mxu0 0.0
      %521 = vmatprep.subr.mxu0 0.0
      %522 = vmatpush1.msra.mxu0 0.0
      %523 = vmatprep.subr.mxu0 0.0
      %524 = vmatpush1.msra.mxu0 0.0
      %525 = vmatprep.subr.mxu0 0.0
      %526 = vmatpush1.msra.mxu0 0.0
      %527 = vmatprep.subr.mxu0 0.0
      %528 = vmatpush1.msra.mxu0 0.0
      %529 = vmatprep.subr.mxu0 0.0
      %530 = vmatpush1.msra.mxu0 0.0
      %531 = vmatprep.subr.mxu0 0.0
      %532 = vmatpush1.msra.mxu0 0.0
      %533 = vmatprep.subr.mxu0 0.0
      %534 = vmatpush1.msra.mxu0 0.0
      %535 = vmatprep.subr.mxu0 0.0
      %536 = vmatpush1.msra.mxu0 0.0
      %537 = vmatprep.subr.mxu0 0.0
      %538 = vmatpush1.msra.mxu0 0.0
      %539 = vmatprep.subr.mxu0 0.0
      %540 = vmatpush1.msra.mxu0 0.0
      %541 = vmatprep.subr.mxu0 0.0
      %542 = vmatpush1.msra.mxu0 0.0
      %543 = vmatprep.subr.mxu0 0.0
      %544 = vmatpush1.msra.mxu0 0.0
      %545 = vmatprep.mubr.f32.mxu0 0.0
      %v546 = vand.u32 %v183, 4294901760
      %v547 = vsub.f32 %v183, %v546
      %548 = vmatmul.mubr.f32.gmra.mrb[0].mxu0 %v547
      %v549 = vpop.f32.mrb[0].mxu0
      %v550 = vadd.f32 %v446, %v549
      %v551 = vpop.f32.mrb[0].mxu0
      %552 = vdwg.mxu0
      %553 = vmatprep.subr.mxu0 0.0
      %v554 = vand.u32 %v191, 4294901760
      %555 = vmatpush1.msra.mxu0 %v554
      %556 = vmatprep.subr.mxu0 0.0
      %v557 = vand.u32 %v192, 4294901760
      %558 = vmatpush1.msra.mxu0 %v557
      %559 = vmatprep.subr.mxu0 0.0
      %v560 = vand.u32 %v193, 4294901760
      %561 = vmatpush1.msra.mxu0 %v560
      %562 = vmatprep.subr.mxu0 0.0
      %v563 = vand.u32 %v194, 4294901760
      %564 = vmatpush1.msra.mxu0 %v563
      %565 = vmatprep.subr.mxu0 0.0
      %v566 = vand.u32 %v195, 4294901760
      %567 = vmatpush1.msra.mxu0 %v566
      %568 = vmatprep.subr.mxu0 0.0
      %v569 = vand.u32 %v196, 4294901760
      %570 = vmatpush1.msra.mxu0 %v569
      %571 = vmatprep.subr.mxu0 0.0
      %v572 = vand.u32 %v197, 4294901760
      %573 = vmatpush1.msra.mxu0 %v572
      %574 = vmatprep.subr.mxu0 0.0
      %v575 = vand.u32 %v198, 4294901760
      %576 = vmatpush1.msra.mxu0 %v575
      %577 = vmatprep.subr.mxu0 0.0
      %v578 = vand.u32 %v199, 4294901760
      %579 = vmatpush1.msra.mxu0 %v578
      %580 = vmatprep.subr.mxu0 0.0
      %v581 = vand.u32 %v200, 4294901760
      %582 = vmatpush1.msra.mxu0 %v581
      %583 = vmatprep.subr.mxu0 0.0
      %v584 = vand.u32 %v201, 4294901760
      %585 = vmatpush1.msra.mxu0 %v584
      %586 = vmatprep.subr.mxu0 0.0
      %v587 = vand.u32 %v202, 4294901760
      %588 = vmatpush1.msra.mxu0 %v587
      %589 = vmatprep.subr.mxu0 0.0
      %v590 = vand.u32 %v203, 4294901760
      %591 = vmatpush1.msra.mxu0 %v590
      %592 = vmatprep.subr.mxu0 0.0
      %v593 = vand.u32 %v204, 4294901760
      %594 = vmatpush1.msra.mxu0 %v593
      %595 = vmatprep.subr.mxu0 0.0
      %v596 = vand.u32 %v205, 4294901760
      %597 = vmatpush1.msra.mxu0 %v596
      %598 = vmatprep.subr.mxu0 0.0
      %v599 = vand.u32 %v206, 4294901760
      %600 = vmatpush1.msra.mxu0 %v599
      %601 = vmatprep.subr.mxu0 0.0
      %602 = vmatpush1.msra.mxu0 0.0
      %603 = vmatprep.subr.mxu0 0.0
      %604 = vmatpush1.msra.mxu0 0.0
      %605 = vmatprep.subr.mxu0 0.0
      %606 = vmatpush1.msra.mxu0 0.0
      %607 = vmatprep.subr.mxu0 0.0
      %608 = vmatpush1.msra.mxu0 0.0
      %609 = vmatprep.subr.mxu0 0.0
      %610 = vmatpush1.msra.mxu0 0.0
      %611 = vmatprep.subr.mxu0 0.0
      %612 = vmatpush1.msra.mxu0 0.0
      %613 = vmatprep.subr.mxu0 0.0
      %614 = vmatpush1.msra.mxu0 0.0
      %615 = vmatprep.subr.mxu0 0.0
      %616 = vmatpush1.msra.mxu0 0.0
      %617 = vmatprep.subr.mxu0 0.0
      %618 = vmatpush1.msra.mxu0 0.0
      %619 = vmatprep.subr.mxu0 0.0
      %620 = vmatpush1.msra.mxu0 0.0
      %621 = vmatprep.subr.mxu0 0.0
      %622 = vmatpush1.msra.mxu0 0.0
      %623 = vmatprep.subr.mxu0 0.0
      %624 = vmatpush1.msra.mxu0 0.0
      %625 = vmatprep.subr.mxu0 0.0
      %626 = vmatpush1.msra.mxu0 0.0
      %627 = vmatprep.subr.mxu0 0.0
      %628 = vmatpush1.msra.mxu0 0.0
      %629 = vmatprep.subr.mxu0 0.0
      %630 = vmatpush1.msra.mxu0 0.0
      %631 = vmatprep.subr.mxu0 0.0
      %632 = vmatpush1.msra.mxu0 0.0
      %633 = vmatprep.mubr.f32.mxu0 0.0
      %v634 = vand.u32 %v183, 4294901760
      %v635 = vsub.f32 %v183, %v634
      %v636 = vand.u32 %v635, 4294901760
      %637 = vmatmul.mubr.f32.gmra.mrb[0].mxu0 %v636
      %v638 = vpop.f32.mrb[0].mxu0
      %v639 = vadd.f32 %v550, %v638
      %v640 = vpop.f32.mrb[0].mxu0
      %641 = vdwg.mxu0
      %642 = vmatprep.subr.mxu0 0.0
      %v643 = vand.u32 %v191, 4294901760
      %v644 = vsub.f32 %v191, %v643
      %v645 = vand.u32 %v644, 4294901760
      %646 = vmatpush1.msra.mxu0 %v645
      %647 = vmatprep.subr.mxu0 0.0
      %v648 = vand.u32 %v192, 4294901760
      %v649 = vsub.f32 %v192, %v648
      %v650 = vand.u32 %v649, 4294901760
      %651 = vmatpush1.msra.mxu0 %v650
      %652 = vmatprep.subr.mxu0 0.0
      %v653 = vand.u32 %v193, 4294901760
      %v654 = vsub.f32 %v193, %v653
      %v655 = vand.u32 %v654, 4294901760
      %656 = vmatpush1.msra.mxu0 %v655
      %657 = vmatprep.subr.mxu0 0.0
      %v658 = vand.u32 %v194, 4294901760
      %v659 = vsub.f32 %v194, %v658
      %v660 = vand.u32 %v659, 4294901760
      %661 = vmatpush1.msra.mxu0 %v660
      %662 = vmatprep.subr.mxu0 0.0
      %v663 = vand.u32 %v195, 4294901760
      %v664 = vsub.f32 %v195, %v663
      %v665 = vand.u32 %v664, 4294901760
      %666 = vmatpush1.msra.mxu0 %v665
      %667 = vmatprep.subr.mxu0 0.0
      %v668 = vand.u32 %v196, 4294901760
      %v669 = vsub.f32 %v196, %v668
      %v670 = vand.u32 %v669, 4294901760
      %671 = vmatpush1.msra.mxu0 %v670
      %672 = vmatprep.subr.mxu0 0.0
      %v673 = vand.u32 %v197, 4294901760
      %v674 = vsub.f32 %v197, %v673
      %v675 = vand.u32 %v674, 4294901760
      %676 = vmatpush1.msra.mxu0 %v675
      %677 = vmatprep.subr.mxu0 0.0
      %v678 = vand.u32 %v198, 4294901760
      %v679 = vsub.f32 %v198, %v678
      %v680 = vand.u32 %v679, 4294901760
      %681 = vmatpush1.msra.mxu0 %v680
      %682 = vmatprep.subr.mxu0 0.0
      %v683 = vand.u32 %v199, 4294901760
      %v684 = vsub.f32 %v199, %v683
      %v685 = vand.u32 %v684, 4294901760
      %686 = vmatpush1.msra.mxu0 %v685
      %687 = vmatprep.subr.mxu0 0.0
      %v688 = vand.u32 %v200, 4294901760
      %v689 = vsub.f32 %v200, %v688
      %v690 = vand.u32 %v689, 4294901760
      %691 = vmatpush1.msra.mxu0 %v690
      %692 = vmatprep.subr.mxu0 0.0
      %v693 = vand.u32 %v201, 4294901760
      %v694 = vsub.f32 %v201, %v693
      %v695 = vand.u32 %v694, 4294901760
      %696 = vmatpush1.msra.mxu0 %v695
      %697 = vmatprep.subr.mxu0 0.0
      %v698 = vand.u32 %v202, 4294901760
      %v699 = vsub.f32 %v202, %v698
      %v700 = vand.u32 %v699, 4294901760
      %701 = vmatpush1.msra.mxu0 %v700
      %702 = vmatprep.subr.mxu0 0.0
      %v703 = vand.u32 %v203, 4294901760
      %v704 = vsub.f32 %v203, %v703
      %v705 = vand.u32 %v704, 4294901760
      %706 = vmatpush1.msra.mxu0 %v705
      %707 = vmatprep.subr.mxu0 0.0
      %v708 = vand.u32 %v204, 4294901760
      %v709 = vsub.f32 %v204, %v708
      %v710 = vand.u32 %v709, 4294901760
      %711 = vmatpush1.msra.mxu0 %v710
      %712 = vmatprep.subr.mxu0 0.0
      %v713 = vand.u32 %v205, 4294901760
      %v714 = vsub.f32 %v205, %v713
      %v715 = vand.u32 %v714, 4294901760
      %716 = vmatpush1.msra.mxu0 %v715
      %717 = vmatprep.subr.mxu0 0.0
      %v718 = vand.u32 %v206, 4294901760
      %v719 = vsub.f32 %v206, %v718
      %v720 = vand.u32 %v719, 4294901760
      %721 = vmatpush1.msra.mxu0 %v720
      %722 = vmatprep.subr.mxu0 0.0
      %723 = vmatpush1.msra.mxu0 0.0
      %724 = vmatprep.subr.mxu0 0.0
      %725 = vmatpush1.msra.mxu0 0.0
      %726 = vmatprep.subr.mxu0 0.0
      %727 = vmatpush1.msra.mxu0 0.0
      %728 = vmatprep.subr.mxu0 0.0
      %729 = vmatpush1.msra.mxu0 0.0
      %730 = vmatprep.subr.mxu0 0.0
      %731 = vmatpush1.msra.mxu0 0.0
      %732 = vmatprep.subr.mxu0 0.0
      %733 = vmatpush1.msra.mxu0 0.0
      %734 = vmatprep.subr.mxu0 0.0
      %735 = vmatpush1.msra.mxu0 0.0
      %736 = vmatprep.subr.mxu0 0.0
      %737 = vmatpush1.msra.mxu0 0.0
      %738 = vmatprep.subr.mxu0 0.0
      %739 = vmatpush1.msra.mxu0 0.0
      %740 = vmatprep.subr.mxu0 0.0
      %741 = vmatpush1.msra.mxu0 0.0
      %742 = vmatprep.subr.mxu0 0.0
      %743 = vmatpush1.msra.mxu0 0.0
      %744 = vmatprep.subr.mxu0 0.0
      %745 = vmatpush1.msra.mxu0 0.0
      %746 = vmatprep.subr.mxu0 0.0
      %747 = vmatpush1.msra.mxu0 0.0
      %748 = vmatprep.subr.mxu0 0.0
      %749 = vmatpush1.msra.mxu0 0.0
      %750 = vmatprep.subr.mxu0 0.0
      %751 = vmatpush1.msra.mxu0 0.0
      %752 = vmatprep.subr.mxu0 0.0
      %753 = vmatpush1.msra.mxu0 0.0
      %754 = vmatprep.mubr.f32.mxu0 0.0
      %v755 = vand.u32 %v183, 4294901760
      %756 = vmatmul.mubr.f32.gmra.mrb[0].mxu0 %v755
      %v757 = vpop.f32.mrb[0].mxu0
      %v758 = vadd.f32 %v639, %v757
      %v759 = vpop.f32.mrb[0].mxu0
      %760 = vdwg.mxu0
      %761 = vmatprep.subr.mxu0 0.0
      %v762 = vand.u32 %v191, 4294901760
      %763 = vmatpush1.msra.mxu0 %v762
      %764 = vmatprep.subr.mxu0 0.0
      %v765 = vand.u32 %v192, 4294901760
      %766 = vmatpush1.msra.mxu0 %v765
      %767 = vmatprep.subr.mxu0 0.0
      %v768 = vand.u32 %v193, 4294901760
      %769 = vmatpush1.msra.mxu0 %v768
      %770 = vmatprep.subr.mxu0 0.0
      %v771 = vand.u32 %v194, 4294901760
      %772 = vmatpush1.msra.mxu0 %v771
      %773 = vmatprep.subr.mxu0 0.0
      %v774 = vand.u32 %v195, 4294901760
      %775 = vmatpush1.msra.mxu0 %v774
      %776 = vmatprep.subr.mxu0 0.0
      %v777 = vand.u32 %v196, 4294901760
      %778 = vmatpush1.msra.mxu0 %v777
      %779 = vmatprep.subr.mxu0 0.0
      %v780 = vand.u32 %v197, 4294901760
      %781 = vmatpush1.msra.mxu0 %v780
      %782 = vmatprep.subr.mxu0 0.0
      %v783 = vand.u32 %v198, 4294901760
      %784 = vmatpush1.msra.mxu0 %v783
      %785 = vmatprep.subr.mxu0 0.0
      %v786 = vand.u32 %v199, 4294901760
      %787 = vmatpush1.msra.mxu0 %v786
      %788 = vmatprep.subr.mxu0 0.0
      %v789 = vand.u32 %v200, 4294901760
      %790 = vmatpush1.msra.mxu0 %v789
      %791 = vmatprep.subr.mxu0 0.0
      %v792 = vand.u32 %v201, 4294901760
      %793 = vmatpush1.msra.mxu0 %v792
      %794 = vmatprep.subr.mxu0 0.0
      %v795 = vand.u32 %v202, 4294901760
      %796 = vmatpush1.msra.mxu0 %v795
      %797 = vmatprep.subr.mxu0 0.0
      %v798 = vand.u32 %v203, 4294901760
      %799 = vmatpush1.msra.mxu0 %v798
      %800 = vmatprep.subr.mxu0 0.0
      %v801 = vand.u32 %v204, 4294901760
      %802 = vmatpush1.msra.mxu0 %v801
      %803 = vmatprep.subr.mxu0 0.0
      %v804 = vand.u32 %v205, 4294901760
      %805 = vmatpush1.msra.mxu0 %v804
      %806 = vmatprep.subr.mxu0 0.0
      %v807 = vand.u32 %v206, 4294901760
      %808 = vmatpush1.msra.mxu0 %v807
      %809 = vmatprep.subr.mxu0 0.0
      %810 = vmatpush1.msra.mxu0 0.0
      %811 = vmatprep.subr.mxu0 0.0
      %812 = vmatpush1.msra.mxu0 0.0
      %813 = vmatprep.subr.mxu0 0.0
      %814 = vmatpush1.msra.mxu0 0.0
      %815 = vmatprep.subr.mxu0 0.0
      %816 = vmatpush1.msra.mxu0 0.0
      %817 = vmatprep.subr.mxu0 0.0
      %818 = vmatpush1.msra.mxu0 0.0
      %819 = vmatprep.subr.mxu0 0.0
      %820 = vmatpush1.msra.mxu0 0.0
      %821 = vmatprep.subr.mxu0 0.0
      %822 = vmatpush1.msra.mxu0 0.0
      %823 = vmatprep.subr.mxu0 0.0
      %824 = vmatpush1.msra.mxu0 0.0
      %825 = vmatprep.subr.mxu0 0.0
      %826 = vmatpush1.msra.mxu0 0.0
      %827 = vmatprep.subr.mxu0 0.0
      %828 = vmatpush1.msra.mxu0 0.0
      %829 = vmatprep.subr.mxu0 0.0
      %830 = vmatpush1.msra.mxu0 0.0
      %831 = vmatprep.subr.mxu0 0.0
      %832 = vmatpush1.msra.mxu0 0.0
      %833 = vmatprep.subr.mxu0 0.0
      %834 = vmatpush1.msra.mxu0 0.0
      %835 = vmatprep.subr.mxu0 0.0
      %836 = vmatpush1.msra.mxu0 0.0
      %837 = vmatprep.subr.mxu0 0.0
      %838 = vmatpush1.msra.mxu0 0.0
      %839 = vmatprep.subr.mxu0 0.0
      %840 = vmatpush1.msra.mxu0 0.0
      %841 = vmatprep.mubr.f32.mxu0 0.0
      %v842 = vand.u32 %v183, 4294901760
      %843 = vmatmul.mubr.f32.gmra.mrb[0].mxu0 %v842
      %v844 = vpop.f32.mrb[0].mxu0
      %v845 = vadd.f32 %v758, %v844
      %v846 = vpop.f32.mrb[0].mxu0
      %847 = vdwg.mxu0
      %v848 = vmul.f32 %v845, %v190
      %v849 = vsel %vm185, 1, 0
      %850 = vset.pattern.permute.xlu0 0
      %851 = vperm.xlu0 %850, %v849
      %v852 = vpop.permute.xlu0 %851
      %vm853 = vcmp.eq.s32.totalorder %v852, 1
      %v854 = vsel %vm853, %v848, 0.0
      %v855 = vlaneseq
      %v856 = vand.u32 %v855, 127
      %857 = vset.pattern.permute.xlu0 0
      %858 = vperm.xlu0 %857, %v184
      %v859 = vpop.permute.xlu0 %858
      %vm860 = vcmp.eq.s32.totalorder %v859, %v856
      %v861 = vsel %vm860, 1, 0
      %v862 = vcvt.s32.f32 %v861
      %vm863 = vcmask 31744
      %v864 = vsel %vm863, %v862, 0.0
      %v865 = vrot.slane %v864, 4
      %v866 = vadd.f32 %v864, %v865
      %v867 = vrot.slane %v866, 2
      %v868 = vadd.f32 %v866, %v867
      %v869 = vrot.slane %v868, 1
      %v870 = vadd.f32 %v868, %v869
      %v871 = vmul.f32 %v862, %v854
      %v872 = vsel %vm863, %v871, 0.0
      %v873 = vrot.slane %v872, 4
      %v874 = vadd.f32 %v872, %v873
      %v875 = vrot.slane %v874, 2
      %v876 = vadd.f32 %v874, %v875
      %v877 = vrot.slane %v876, 1
      %v878 = vadd.f32 %v876, %v877
      %v879 = vsel %vm863, %v854, 0.0
      %v880 = vrot.slane %v879, 4
      %v881 = vadd.f32 %v879, %v880
      %v882 = vrot.slane %v881, 2
      %v883 = vadd.f32 %v881, %v882
      %v884 = vrot.slane %v883, 1
      %v885 = vadd.f32 %v883, %v884
      %vm886 = vcmask 24576
      %887 = vst.msk [vmem:[%s182] sm:$0x1] %vm886, %v870
      %888 = vst.msk [vmem:[%s182 + $0x1] sm:$0x1] %vm886, %v878
      %889 = vst.msk [vmem:[%s182 + $0x2] sm:$0x1] %vm886, %v885
      %p890 = scmp.lt.s32.totalorder %s14, 3
      %s891 = scalar_select %p890, %s14, 3
      %s892 = smul.addr %s891, 4
      %s893 = scalar_lea.vmem %s3, %s892
      // Predicated region
      $region33: #{tpu_custom_call.1} parent=31 // pred_check
        %p894 = pneg %p105
      $region34: #{tpu_custom_call.1} parent=31 // pred_check_branch
        %896 = sbr.rel (%p894) target = $region36
      $region35: #{tpu_custom_call.1} parent=31 // pred_region
        _
      $region36: #{tpu_custom_call.1} parent=31 // pred_fallthru
        _
    $region32: #{tpu_custom_call.1} parent=5 // pred_fallthru
      _
    %p897 = scmp.le.s32.totalorder 2, %s9
    // Predicated region
    $region37: #{tpu_custom_call.1} parent=5 // pred_check
      %p898 = pneg %p897
    $region38: #{tpu_custom_call.1} parent=5 // pred_check_branch
      %900 = sbr.rel (%p898) target = $region40
    $region39: #{tpu_custom_call.1} parent=5 // pred_region
      %s901 = ssub.s32 %s9, 2
      // Predicated region
      $region41: #{tpu_custom_call.1} parent=39 // pred_check
        %p902 = pneg %p111
      $region42: #{tpu_custom_call.1} parent=39 // pred_check_branch
        %904 = sbr.rel (%p902) target = $region44
      $region43: #{tpu_custom_call.1} parent=39 // pred_region
        %p905 = scmp.lt.s32.totalorder %s15, 3
        %s906 = scalar_select %p905, %s15, 3
        %s907 = smul.addr %s906, 4
        %s908 = scalar_lea.vmem %s3, %s907
      $region44: #{tpu_custom_call.1} parent=39 // pred_fallthru
        _
    $region40: #{tpu_custom_call.1} parent=5 // pred_fallthru
      _
  $region6: #{tpu_custom_call.1} parent=0 // loop_footer
    %s13 = sadd.s32 1, %s9
  $region7: #{tpu_custom_call.1} parent=0 // loop_footer_branch
    %8 = sbr.rel target = $region3
  $region8: #{tpu_custom_call.1} parent=0 // loop_exit
    _

</llo_original>
